<compile_context>
chip_gen: v7x
topology: tpu7x:2x2x1
jax: 0.10.0
libtpu: 0.0.40
codegen_flags: <defaults>
</compile_context>

<pallas_src>
import functools

import jax
import jax.numpy as jnp
from jax.experimental import pallas as pl
from jax.experimental.pallas import tpu as pltpu

HIDDEN_DIMS = (500, 100, 20)
LANE = 128
_MIB = 1024 * 1024


def mlp_kernel(x_ref,
               w0_ref, b0_ref,
               w1_ref, b1_ref,
               w2_ref, b2_ref,
               w3_ref, b3_ref,
               o_ref):
    # x arrives f32; cast to bf16 in-kernel (essentially free on the VPU) so the
    # wrapper doesn't spend a separate XLA op + HBM round trip on the cast.
    x = x_ref[...].astype(jnp.bfloat16)
    # fc_in + ReLU (bf16 x bf16 -> f32 accumulation on the MXU; bias/ReLU in f32)
    h = jnp.dot(x, w0_ref[...], preferred_element_type=jnp.float32)
    h = jnp.maximum(h + b0_ref[...], 0.0)
    # fc1 + ReLU
    h = jnp.dot(h.astype(jnp.bfloat16), w1_ref[...],
                preferred_element_type=jnp.float32)
    h = jnp.maximum(h + b1_ref[...], 0.0)
    # fc2 + ReLU
    h = jnp.dot(h.astype(jnp.bfloat16), w2_ref[...],
                preferred_element_type=jnp.float32)
    h = jnp.maximum(h + b2_ref[...], 0.0)
    # fc_out (no activation); output stored at its true width (block last dim
    # equals the full array's last dim, so the (8,128) rule is satisfied).
    y = jnp.dot(h.astype(jnp.bfloat16), w3_ref[...],
                preferred_element_type=jnp.float32)
    o_ref[...] = (y + b3_ref[...]).astype(o_ref.dtype)


def pack_params(params):
    """One-time packing OUTSIDE jit.

    - pad the 500-wide hidden layer to 512 (W0 cols, b0, W1 rows) with zeros so
      h1 is a lane-aligned slab and fc1's contraction dim is a multiple of 128,
    - cast weights to bf16 for the MXU; biases stay f32 for VPU math.
    """
    (w0, b0), (w1, b1), (w2, b2), (w3, b3) = params
    pad0 = (-w0.shape[1]) % LANE  # 500 -> 512
    if pad0:
        w0 = jnp.pad(w0, ((0, 0), (0, pad0)))
        b0 = jnp.pad(b0, ((0, 0), (0, pad0)))
        w1 = jnp.pad(w1, ((0, pad0), (0, 0)))
    packed = []
    for (w, b) in ((w0, b0), (w1, b1), (w2, b2), (w3, b3)):
        packed.append((w.astype(jnp.bfloat16), b.astype(jnp.float32)))
    return packed


def _pick_block_b(batch, block_b):
    """Static (trace-time) batch-tile choice.

    Never exceed the batch; keep the tile a multiple of 8 sublanes unless it
    equals the full batch. No forced multi-step split: on single-TC v5e/v6e the
    extra grid steps are pure serial overhead.
    """
    bb = min(block_b, batch)
    if bb != batch:
        bb = max(8, (bb // 8) * 8)
    return bb
    # TODO(synk): on v7x, prefer an even ceil(B/bb) so the 'parallel' axis
    # balances across both TensorCores (query pltpu.get_tpu_info()).


@functools.partial(jax.jit, static_argnames=("block_b",))
def mlp_forward(x, packed_params, block_b=2048):
    """x: [B, input_dim] float32; packed_params: output of pack_params()."""
    B, input_dim = x.shape
    output_dim = packed_params[-1][0].shape[1]

    bb = _pick_block_b(B, block_b)
    grid = (pl.cdiv(B, bb),)

    def x_map(i):
        return (i, 0)

    def const_map(i):
        return (0, 0)

    in_specs = [pl.BlockSpec((bb, input_dim), x_map)]
    flat_params = []
    for (w, b) in packed_params:
        # Constant index map: copied once; single-buffered to save VMEM.
        in_specs.append(pl.BlockSpec(w.shape, const_map,
                                     pipeline_mode=pl.Buffered(1)))
        in_specs.append(pl.BlockSpec(b.shape, const_map,
                                     pipeline_mode=pl.Buffered(1)))
        flat_params += [w, b]

    # Per-step VMEM estimate (rough: ~12 KB per batch row for activations +
    # double-buffered I/O, plus headroom for the resident weights/temps),
    # clamped to stay within v7x's 64 MiB per-TensorCore VMEM.
    vmem_limit = int(bb * 12 * 1024 + 4 * _MIB)
    vmem_limit = max(32 * _MIB, min(64 * _MIB, vmem_limit))

    # Advisory cost estimate for XLA's surrounding-op scheduling.
    dims = [input_dim] + [w.shape[1] for (w, _) in packed_params]
    flops = 2 * B * sum(a * c for a, c in zip(dims[:-1], dims[1:]))
    bytes_accessed = (B * input_dim * 4                      # f32 x in
                      + B * output_dim * 4                   # f32 out
                      + sum(a * c * 2 + c * 4                # bf16 W, f32 b
                            for a, c in zip(dims[:-1], dims[1:])))

    y = pl.pallas_call(
        mlp_kernel,
        out_shape=jax.ShapeDtypeStruct((B, output_dim), jnp.float32),
        grid=grid,
        in_specs=in_specs,
        out_specs=pl.BlockSpec((bb, output_dim), x_map),
        compiler_params=pltpu.CompilerParams(
            dimension_semantics=("parallel",),
            vmem_limit_bytes=vmem_limit),
        cost_estimate=pl.CostEstimate(
            flops=flops, transcendentals=0, bytes_accessed=bytes_accessed),
    )(x, *flat_params)

    return y


def init_params(key, input_dim, output_dim):
    """Deterministic init mimicking torch.nn.Linear (uniform +-1/sqrt(fan_in)).

    Weights stored transposed vs. PyTorch, i.e. [in_dim, out_dim], so the
    kernel computes y = x @ W + b (== PyTorch x @ W_pt.T + b).
    """
    dims = (input_dim,) + HIDDEN_DIMS + (output_dim,)
    params = []
    for fan_in, fan_out in zip(dims[:-1], dims[1:]):
        key, kw, kb = jax.random.split(key, 3)
        bound = 1.0 / jnp.sqrt(fan_in)
        w = jax.random.uniform(kw, (fan_in, fan_out), jnp.float32, -bound, bound)
        b = jax.random.uniform(kb, (1, fan_out), jnp.float32, -bound, bound)
        params.append((w, b))
    return params


def mlp_reference(x, params):
    """Plain-JAX reference mirroring the kernel numerics (bf16 MXU inputs,
    f32 accumulation, f32 bias + ReLU). Uses the unpadded f32 params — the
    zero padding in pack_params is numerically inert."""
    h = x.astype(jnp.bfloat16)
    n = len(params)
    for i, (w, b) in enumerate(params):
        h = jnp.dot(h, w.astype(jnp.bfloat16),
                    preferred_element_type=jnp.float32) + b
        if i < n - 1:
            h = jnp.maximum(h, 0.0).astype(jnp.bfloat16)
    return h


if __name__ == "__main__":
    key = jax.random.PRNGKey(0)
    input_dim, output_dim = 32, 2

    k_x, k_x2, k_p = jax.random.split(key, 3)
    params = init_params(k_p, input_dim, output_dim)
    packed = pack_params(params)   # once, outside jit

    # Test 1: small batch (single tile == full batch).
    B = 8
    x = jax.random.normal(k_x, (B, input_dim), jnp.float32)
    y = mlp_forward(x, packed)
    jax.block_until_ready(y)
    y_ref = mlp_reference(x, params)
    assert y.shape == (B, output_dim), y.shape
    assert jnp.allclose(y, y_ref, atol=5e-3, rtol=5e-3), \
        float(jnp.max(jnp.abs(y - y_ref)))

    # Test 2: batch not divisible by 8 handled as a single full-batch tile.
    B2 = 20
    x2 = jax.random.normal(k_x2, (B2, input_dim), jnp.float32)
    y2 = mlp_forward(x2, packed)
    jax.block_until_ready(y2)
    y2_ref = mlp_reference(x2, params)
    assert y2.shape == (B2, output_dim), y2.shape
    assert jnp.allclose(y2, y2_ref, atol=5e-3, rtol=5e-3), \
        float(jnp.max(jnp.abs(y2 - y2_ref)))

    # Test 3: force a small tile -> multiple grid steps with a ragged/padded
    # last tile (exercises the multi-step + partial-block path).
    y3 = mlp_forward(x2, packed, block_b=8)
    jax.block_until_ready(y3)
    assert y3.shape == (B2, output_dim), y3.shape
    assert jnp.allclose(y3, y2_ref, atol=5e-3, rtol=5e-3), \
        float(jnp.max(jnp.abs(y3 - y2_ref)))

    print("KERNEL_OK")
</pallas_src>

<mosaic_0001>
module attributes {stable_mosaic.version = 11 : i64} {
  func.func @mlp_kernel(%arg0: i32, %arg1: memref<8x32xf32, #tpu.memory_space<vmem>>, %arg2: memref<32x512xbf16, #tpu.memory_space<vmem>>, %arg3: memref<1x512xf32, #tpu.memory_space<vmem>>, %arg4: memref<512x100xbf16, #tpu.memory_space<vmem>>, %arg5: memref<1x100xf32, #tpu.memory_space<vmem>>, %arg6: memref<100x20xbf16, #tpu.memory_space<vmem>>, %arg7: memref<1x20xf32, #tpu.memory_space<vmem>>, %arg8: memref<20x2xbf16, #tpu.memory_space<vmem>>, %arg9: memref<1x2xf32, #tpu.memory_space<vmem>>, %arg10: memref<8x2xf32, #tpu.memory_space<vmem>>) attributes {dimension_semantics = [#tpu.dimension_semantics<parallel>], iteration_bounds = array<i64: 1>, scalar_prefetch = 0 : i64, scratch_operands = 0 : i64, tpu.core_type = #tpu.core_type<tc>, window_params = [{transform_indices = @transform_0, window_bounds = array<i64: 8, 32>}, {pipeline_mode = #tpu.pipeline_mode<synchronous>, transform_indices = @transform_1, window_bounds = array<i64: 32, 512>}, {pipeline_mode = #tpu.pipeline_mode<synchronous>, transform_indices = @transform_2, window_bounds = array<i64: 1, 512>}, {pipeline_mode = #tpu.pipeline_mode<synchronous>, transform_indices = @transform_3, window_bounds = array<i64: 512, 100>}, {pipeline_mode = #tpu.pipeline_mode<synchronous>, transform_indices = @transform_4, window_bounds = array<i64: 1, 100>}, {pipeline_mode = #tpu.pipeline_mode<synchronous>, transform_indices = @transform_5, window_bounds = array<i64: 100, 20>}, {pipeline_mode = #tpu.pipeline_mode<synchronous>, transform_indices = @transform_6, window_bounds = array<i64: 1, 20>}, {pipeline_mode = #tpu.pipeline_mode<synchronous>, transform_indices = @transform_7, window_bounds = array<i64: 20, 2>}, {pipeline_mode = #tpu.pipeline_mode<synchronous>, transform_indices = @transform_8, window_bounds = array<i64: 1, 2>}, {transform_indices = @transform_9, window_bounds = array<i64: 8, 2>}]} {
    %c0 = arith.constant 0 : index
    %c0_0 = arith.constant 0 : index
    %0 = vector.load %arg1[%c0, %c0_0] : memref<8x32xf32, #tpu.memory_space<vmem>>, vector<8x32xf32>
    %1 = arith.truncf %0 : vector<8x32xf32> to vector<8x32xbf16>
    %c0_1 = arith.constant 0 : index
    %c0_2 = arith.constant 0 : index
    %2 = vector.load %arg2[%c0_1, %c0_2] : memref<32x512xbf16, #tpu.memory_space<vmem>>, vector<32x512xbf16>
    %cst = arith.constant dense<0.000000e+00> : vector<8x512xf32>
    %3 = tpu.matmul %1, %2, %cst {dimension_numbers = #tpu.dot_dimension_numbers<[1], [0], [0], [1], [0, 0, 1, 1], [], []>} : vector<8x32xbf16>, vector<32x512xbf16>, vector<8x512xf32> -> vector<8x512xf32>
    %c0_3 = arith.constant 0 : index
    %c0_4 = arith.constant 0 : index
    %4 = vector.load %arg3[%c0_3, %c0_4] : memref<1x512xf32, #tpu.memory_space<vmem>>, vector<1x512xf32>
    %5 = vector.broadcast %4 : vector<1x512xf32> to vector<8x512xf32>
    %6 = arith.addf %3, %5 : vector<8x512xf32>
    %cst_5 = arith.constant 0.000000e+00 : f32
    %7 = vector.broadcast %cst_5 : f32 to vector<8x512xf32>
    %8 = arith.maximumf %6, %7 : vector<8x512xf32>
    %9 = arith.truncf %8 : vector<8x512xf32> to vector<8x512xbf16>
    %c0_6 = arith.constant 0 : index
    %c0_7 = arith.constant 0 : index
    %10 = vector.load %arg4[%c0_6, %c0_7] : memref<512x100xbf16, #tpu.memory_space<vmem>>, vector<512x100xbf16>
    %cst_8 = arith.constant dense<0.000000e+00> : vector<8x100xf32>
    %11 = tpu.matmul %9, %10, %cst_8 {dimension_numbers = #tpu.dot_dimension_numbers<[1], [0], [0], [1], [0, 0, 1, 1], [], []>} : vector<8x512xbf16>, vector<512x100xbf16>, vector<8x100xf32> -> vector<8x100xf32>
    %c0_9 = arith.constant 0 : index
    %c0_10 = arith.constant 0 : index
    %12 = vector.load %arg5[%c0_9, %c0_10] : memref<1x100xf32, #tpu.memory_space<vmem>>, vector<1x100xf32>
    %13 = vector.broadcast %12 : vector<1x100xf32> to vector<8x100xf32>
    %14 = arith.addf %11, %13 : vector<8x100xf32>
    %cst_11 = arith.constant 0.000000e+00 : f32
    %15 = vector.broadcast %cst_11 : f32 to vector<8x100xf32>
    %16 = arith.maximumf %14, %15 : vector<8x100xf32>
    %17 = arith.truncf %16 : vector<8x100xf32> to vector<8x100xbf16>
    %c0_12 = arith.constant 0 : index
    %c0_13 = arith.constant 0 : index
    %18 = vector.load %arg6[%c0_12, %c0_13] : memref<100x20xbf16, #tpu.memory_space<vmem>>, vector<100x20xbf16>
    %cst_14 = arith.constant dense<0.000000e+00> : vector<8x20xf32>
    %19 = tpu.matmul %17, %18, %cst_14 {dimension_numbers = #tpu.dot_dimension_numbers<[1], [0], [0], [1], [0, 0, 1, 1], [], []>} : vector<8x100xbf16>, vector<100x20xbf16>, vector<8x20xf32> -> vector<8x20xf32>
    %c0_15 = arith.constant 0 : index
    %c0_16 = arith.constant 0 : index
    %20 = vector.load %arg7[%c0_15, %c0_16] : memref<1x20xf32, #tpu.memory_space<vmem>>, vector<1x20xf32>
    %21 = vector.broadcast %20 : vector<1x20xf32> to vector<8x20xf32>
    %22 = arith.addf %19, %21 : vector<8x20xf32>
    %cst_17 = arith.constant 0.000000e+00 : f32
    %23 = vector.broadcast %cst_17 : f32 to vector<8x20xf32>
    %24 = arith.maximumf %22, %23 : vector<8x20xf32>
    %25 = arith.truncf %24 : vector<8x20xf32> to vector<8x20xbf16>
    %c0_18 = arith.constant 0 : index
    %c0_19 = arith.constant 0 : index
    %26 = vector.load %arg8[%c0_18, %c0_19] : memref<20x2xbf16, #tpu.memory_space<vmem>>, vector<20x2xbf16>
    %cst_20 = arith.constant dense<0.000000e+00> : vector<8x2xf32>
    %27 = tpu.matmul %25, %26, %cst_20 {dimension_numbers = #tpu.dot_dimension_numbers<[1], [0], [0], [1], [0, 0, 1, 1], [], []>} : vector<8x20xbf16>, vector<20x2xbf16>, vector<8x2xf32> -> vector<8x2xf32>
    %c0_21 = arith.constant 0 : index
    %c0_22 = arith.constant 0 : index
    %28 = vector.load %arg9[%c0_21, %c0_22] : memref<1x2xf32, #tpu.memory_space<vmem>>, vector<1x2xf32>
    %29 = vector.broadcast %28 : vector<1x2xf32> to vector<8x2xf32>
    %30 = arith.addf %27, %29 : vector<8x2xf32>
    %c0_23 = arith.constant 0 : index
    %c0_24 = arith.constant 0 : index
    %31 = vector.load %arg10[%c0_23, %c0_24] : memref<8x2xf32, #tpu.memory_space<vmem>>, vector<8x2xf32>
    tpu.vector_store %arg10[%c0_23, %c0_24], %30 {strides = array<i32>} : memref<8x2xf32, #tpu.memory_space<vmem>>, vector<8x2xf32>,
    return
  }
  func.func @transform_0(%arg0: i32) -> (i32, i32) {
    %c0_i32 = arith.constant 0 : i32
    %c0_i32_0 = arith.constant 0 : i32
    return %arg0, %c0_i32 : i32, i32
  }
  func.func @transform_1(%arg0: i32) -> (i32, i32) {
    %c0_i32 = arith.constant 0 : i32
    %c0_i32_0 = arith.constant 0 : i32
    %c0_i32_1 = arith.constant 0 : i32
    return %c0_i32, %c0_i32_0 : i32, i32
  }
  func.func @transform_2(%arg0: i32) -> (i32, i32) {
    %c0_i32 = arith.constant 0 : i32
    %c0_i32_0 = arith.constant 0 : i32
    %c0_i32_1 = arith.constant 0 : i32
    return %c0_i32, %c0_i32_0 : i32, i32
  }
  func.func @transform_3(%arg0: i32) -> (i32, i32) {
    %c0_i32 = arith.constant 0 : i32
    %c0_i32_0 = arith.constant 0 : i32
    %c0_i32_1 = arith.constant 0 : i32
    return %c0_i32, %c0_i32_0 : i32, i32
  }
  func.func @transform_4(%arg0: i32) -> (i32, i32) {
    %c0_i32 = arith.constant 0 : i32
    %c0_i32_0 = arith.constant 0 : i32
    %c0_i32_1 = arith.constant 0 : i32
    return %c0_i32, %c0_i32_0 : i32, i32
  }
  func.func @transform_5(%arg0: i32) -> (i32, i32) {
    %c0_i32 = arith.constant 0 : i32
    %c0_i32_0 = arith.constant 0 : i32
    %c0_i32_1 = arith.constant 0 : i32
    return %c0_i32, %c0_i32_0 : i32, i32
  }
  func.func @transform_6(%arg0: i32) -> (i32, i32) {
    %c0_i32 = arith.constant 0 : i32
    %c0_i32_0 = arith.constant 0 : i32
    %c0_i32_1 = arith.constant 0 : i32
    return %c0_i32, %c0_i32_0 : i32, i32
  }
  func.func @transform_7(%arg0: i32) -> (i32, i32) {
    %c0_i32 = arith.constant 0 : i32
    %c0_i32_0 = arith.constant 0 : i32
    %c0_i32_1 = arith.constant 0 : i32
    return %c0_i32, %c0_i32_0 : i32, i32
  }
  func.func @transform_8(%arg0: i32) -> (i32, i32) {
    %c0_i32 = arith.constant 0 : i32
    %c0_i32_0 = arith.constant 0 : i32
    %c0_i32_1 = arith.constant 0 : i32
    return %c0_i32, %c0_i32_0 : i32, i32
  }
  func.func @transform_9(%arg0: i32) -> (i32, i32) {
    %c0_i32 = arith.constant 0 : i32
    %c0_i32_0 = arith.constant 0 : i32
    return %arg0, %c0_i32 : i32, i32
  }
}

</mosaic_0001>

<llo_original>
// kernel: mlp_forward.1
$region0: #{mlp_forward.1}
  #allocation0 [shape = 'u32[]', space=smem, size = 0x4, offset = 0x4, fixed_abs, tag = 'smem constant byte address 0x4 - core index']
  #allocation1 [shape = 'u32[144,128]{1,0:T(1,128)}', space=vmem, size = 0x12000, scoped, tag = 'internal scratch']
  %s0 = inlined_call_operand.vmem [shape: f32[8,32], index: 0, kind: input, shape index: {}]
  %s1 = inlined_call_operand.vmem [shape: bf16[32,512], index: 1, kind: input, shape index: {}]
  %s2 = inlined_call_operand.vmem [shape: f32[1,512], index: 2, kind: input, shape index: {}]
  %s3 = inlined_call_operand.vmem [shape: bf16[512,100], index: 3, kind: input, shape index: {}]
  %s4 = inlined_call_operand.vmem [shape: f32[1,100], index: 4, kind: input, shape index: {}]
  %s5 = inlined_call_operand.vmem [shape: bf16[100,20], index: 5, kind: input, shape index: {}]
  %s6 = inlined_call_operand.vmem [shape: f32[1,20], index: 6, kind: input, shape index: {}]
  %s7 = inlined_call_operand.vmem [shape: bf16[20,2], index: 7, kind: input, shape index: {}]
  %s8 = inlined_call_operand.vmem [shape: f32[1,2], index: 8, kind: input, shape index: {}]
  %s9 = inlined_call_operand.vmem [shape: f32[8,2], index: 9, kind: output, shape index: {}]
  %s10 = sld [smem:[#allocation0]]
  $region46: #{mlp_forward.1} parent=0
    _
  %s12 = ssub.s32 1, %s10
  %s13 = scalar_select 0, %s12, %s10
  // Predicated region
  $region2: #{mlp_forward.1} parent=0 // pred_check
    _
  $region3: #{mlp_forward.1} parent=0 // pred_check_branch
    %15 = sbr.rel (0) target = $region5
  $region4: #{mlp_forward.1} parent=0 // pred_region
    _
  $region5: #{mlp_forward.1} parent=0 // pred_fallthru
    _
  // Predicated region
  $region6: #{mlp_forward.1} parent=0 // pred_check
    _
  $region7: #{mlp_forward.1} parent=0 // pred_check_branch
    %17 = sbr.rel (0) target = $region9
  $region8: #{mlp_forward.1} parent=0 // pred_region
    _
  $region9: #{mlp_forward.1} parent=0 // pred_fallthru
    _
  // Predicated region
  $region10: #{mlp_forward.1} parent=0 // pred_check
    _
  $region11: #{mlp_forward.1} parent=0 // pred_check_branch
    %19 = sbr.rel (0) target = $region13
  $region12: #{mlp_forward.1} parent=0 // pred_region
    _
  $region13: #{mlp_forward.1} parent=0 // pred_fallthru
    _
  // Predicated region
  $region14: #{mlp_forward.1} parent=0 // pred_check
    _
  $region15: #{mlp_forward.1} parent=0 // pred_check_branch
    %21 = sbr.rel (0) target = $region17
  $region16: #{mlp_forward.1} parent=0 // pred_region
    _
  $region17: #{mlp_forward.1} parent=0 // pred_fallthru
    _
  // Predicated region
  $region18: #{mlp_forward.1} parent=0 // pred_check
    _
  $region19: #{mlp_forward.1} parent=0 // pred_check_branch
    %23 = sbr.rel (0) target = $region21
  $region20: #{mlp_forward.1} parent=0 // pred_region
    _
  $region21: #{mlp_forward.1} parent=0 // pred_fallthru
    _
  // Predicated region
  $region22: #{mlp_forward.1} parent=0 // pred_check
    _
  $region23: #{mlp_forward.1} parent=0 // pred_check_branch
    %25 = sbr.rel (0) target = $region25
  $region24: #{mlp_forward.1} parent=0 // pred_region
    _
  $region25: #{mlp_forward.1} parent=0 // pred_fallthru
    _
  // Predicated region
  $region26: #{mlp_forward.1} parent=0 // pred_check
    _
  $region27: #{mlp_forward.1} parent=0 // pred_check_branch
    %27 = sbr.rel (0) target = $region29
  $region28: #{mlp_forward.1} parent=0 // pred_region
    _
  $region29: #{mlp_forward.1} parent=0 // pred_fallthru
    _
  // Predicated region
  $region30: #{mlp_forward.1} parent=0 // pred_check
    _
  $region31: #{mlp_forward.1} parent=0 // pred_check_branch
    %29 = sbr.rel (0) target = $region33
  $region32: #{mlp_forward.1} parent=0 // pred_region
    _
  $region33: #{mlp_forward.1} parent=0 // pred_fallthru
    _
  // Predicated region
  $region34: #{mlp_forward.1} parent=0 // pred_check
    _
  $region35: #{mlp_forward.1} parent=0 // pred_check_branch
    %31 = sbr.rel (0) target = $region37
  $region36: #{mlp_forward.1} parent=0 // pred_region
    _
  $region37: #{mlp_forward.1} parent=0 // pred_fallthru
    _
  %v33 = vld [vmem:[%s0] sm:$0xff]
  %v34 = vpack.c.bf16 %v33, %v33
  %v35 = vld [vmem:[%s1] sm:$0xff]
  %v36 = vld [vmem:[%s1 + $0x8] sm:$0xff]
  %v37 = vld [vmem:[%s1 + $0x10] sm:$0xff]
  %v38 = vld [vmem:[%s1 + $0x18] sm:$0xff]
  %v39 = vld [vmem:[%s1 + $0x20] sm:$0xff]
  %v40 = vld [vmem:[%s1 + $0x28] sm:$0xff]
  %v41 = vld [vmem:[%s1 + $0x30] sm:$0xff]
  %v42 = vld [vmem:[%s1 + $0x38] sm:$0xff]
  %v43 = vld [vmem:[%s2] sm:$0xf]
  %v45 = vlaneseq
  %v46 = vshrl.u32 %v45, 7
  %v47 = vsub.s32 0, %v46
  %v48 = vrot.slane %v43, %v47
  %v49 = vlaneseq
  %v50 = vshrl.u32 %v49, 7
  %v51 = vsub.s32 1, %v50
  %v52 = vrot.slane %v43, %v51
  %v53 = vlaneseq
  %v54 = vshrl.u32 %v53, 7
  %v55 = vsub.s32 2, %v54
  %v56 = vrot.slane %v43, %v55
  %v57 = vlaneseq
  %v58 = vshrl.u32 %v57, 7
  %v59 = vsub.s32 3, %v58
  %v60 = vrot.slane %v43, %v59
  %v73 = vunpack.c.l.b16 %v35
  %v74 = vunpack.c.h.b16 %v35
  %v75 = vunpack.c.l.b16 %v36
  %v76 = vunpack.c.h.b16 %v36
  %v77 = vunpack.c.l.b16 %v37
  %v78 = vunpack.c.h.b16 %v37
  %v79 = vunpack.c.l.b16 %v38
  %v80 = vunpack.c.h.b16 %v38
  %v81 = vunpack.c.l.b16 %v39
  %v82 = vunpack.c.h.b16 %v39
  %v83 = vunpack.c.l.b16 %v40
  %v84 = vunpack.c.h.b16 %v40
  %v85 = vunpack.c.l.b16 %v41
  %v86 = vunpack.c.h.b16 %v41
  %v87 = vunpack.c.l.b16 %v42
  %v88 = vunpack.c.h.b16 %v42
  %v89 = vpack.c.b16 %v77, %v73
  %v90 = vpack.c.b16 %v78, %v74
  %v91 = vpack.c.b16 %v79, %v75
  %v92 = vpack.c.b16 %v80, %v76
  %v93 = vpack.c.b16 %v85, %v81
  %v94 = vpack.c.b16 %v86, %v82
  %v95 = vpack.c.b16 %v87, %v83
  %v96 = vpack.c.b16 %v88, %v84
  %vm105 = vcmask 261120
  %v107 = vsel %vm105, %v34, 0
  %109 = vmatprep.subr.bf16.mxu0 %v90
  %110 = vmatpush1.bf16.msra.mxu0 %v89
  %111 = vmatprep.subr.bf16.mxu0 %v94
  %112 = vmatpush1.bf16.msra.mxu0 %v93
  %113 = vmatprep.subr.bf16.mxu0 0
  %114 = vmatpush1.bf16.msra.mxu0 0
  %115 = vmatprep.subr.bf16.mxu0 0
  %116 = vmatpush1.bf16.msra.mxu0 0
  %117 = vmatprep.subr.bf16.mxu0 0
  %118 = vmatpush1.bf16.msra.mxu0 0
  %119 = vmatprep.subr.bf16.mxu0 0
  %120 = vmatpush1.bf16.msra.mxu0 0
  %121 = vmatprep.subr.bf16.mxu0 0
  %122 = vmatpush1.bf16.msra.mxu0 0
  %123 = vmatprep.subr.bf16.mxu0 0
  %124 = vmatpush1.bf16.msra.mxu0 0
  %125 = vmatprep.subr.bf16.mxu0 0
  %126 = vmatpush1.bf16.msra.mxu0 0
  %127 = vmatprep.subr.bf16.mxu0 0
  %128 = vmatpush1.bf16.msra.mxu0 0
  %129 = vmatprep.subr.bf16.mxu0 0
  %130 = vmatpush1.bf16.msra.mxu0 0
  %131 = vmatprep.subr.bf16.mxu0 0
  %132 = vmatpush1.bf16.msra.mxu0 0
  %133 = vmatprep.subr.bf16.mxu0 0
  %134 = vmatpush1.bf16.msra.mxu0 0
  %135 = vmatprep.subr.bf16.mxu0 0
  %136 = vmatpush1.bf16.msra.mxu0 0
  %137 = vmatprep.subr.bf16.mxu0 0
  %138 = vmatpush1.bf16.msra.mxu0 0
  %139 = vmatprep.subr.bf16.mxu0 0
  %140 = vmatpush1.bf16.msra.mxu0 0
  %141 = vmatprep.mubr.bf16.mxu0 0
  %142 = vmatmul.mubr.bf16.gmra.mrb[0].mxu0 %v107
  %v143 = vpop.f32.mrb[0].mxu0
  %v144 = vadd.f32 %v48, %v143
  %v145 = vpop.f32.mrb[0].mxu0
  %v146 = vadd.f32 %v52, %v145
  %v147 = vpop.f32.mrb[0].mxu0
  %v148 = vpop.f32.mrb[0].mxu0
  %149 = vdwg.mxu0
  %150 = vmatprep.subr.bf16.mxu0 %v92
  %151 = vmatpush1.bf16.msra.mxu0 %v91
  %152 = vmatprep.subr.bf16.mxu0 %v96
  %153 = vmatpush1.bf16.msra.mxu0 %v95
  %154 = vmatprep.subr.bf16.mxu0 0
  %155 = vmatpush1.bf16.msra.mxu0 0
  %156 = vmatprep.subr.bf16.mxu0 0
  %157 = vmatpush1.bf16.msra.mxu0 0
  %158 = vmatprep.subr.bf16.mxu0 0
  %159 = vmatpush1.bf16.msra.mxu0 0
  %160 = vmatprep.subr.bf16.mxu0 0
  %161 = vmatpush1.bf16.msra.mxu0 0
  %162 = vmatprep.subr.bf16.mxu0 0
  %163 = vmatpush1.bf16.msra.mxu0 0
  %164 = vmatprep.subr.bf16.mxu0 0
  %165 = vmatpush1.bf16.msra.mxu0 0
  %166 = vmatprep.subr.bf16.mxu0 0
  %167 = vmatpush1.bf16.msra.mxu0 0
  %168 = vmatprep.subr.bf16.mxu0 0
  %169 = vmatpush1.bf16.msra.mxu0 0
  %170 = vmatprep.subr.bf16.mxu0 0
  %171 = vmatpush1.bf16.msra.mxu0 0
  %172 = vmatprep.subr.bf16.mxu0 0
  %173 = vmatpush1.bf16.msra.mxu0 0
  %174 = vmatprep.subr.bf16.mxu0 0
  %175 = vmatpush1.bf16.msra.mxu0 0
  %176 = vmatprep.subr.bf16.mxu0 0
  %177 = vmatpush1.bf16.msra.mxu0 0
  %178 = vmatprep.subr.bf16.mxu0 0
  %179 = vmatpush1.bf16.msra.mxu0 0
  %180 = vmatprep.subr.bf16.mxu0 0
  %181 = vmatpush1.bf16.msra.mxu0 0
  %182 = vmatprep.mubr.bf16.mxu0 0
  %183 = vmatmul.mubr.bf16.gmra.mrb[0].mxu0 %v107
  %v184 = vpop.f32.mrb[0].mxu0
  %v185 = vadd.f32 %v56, %v184
  %v186 = vpop.f32.mrb[0].mxu0
  %v187 = vadd.f32 %v60, %v186
  %v188 = vpop.f32.mrb[0].mxu0
  %v189 = vpop.f32.mrb[0].mxu0
  %190 = vdwg.mxu0
  %v191 = vmax.f32 %v144, 0.0
  %v192 = vmax.f32 %v146, 0.0
  %v193 = vmax.f32 %v185, 0.0
  %v194 = vmax.f32 %v187, 0.0
  %v195 = vpack.c.bf16 %v191, %v191
  %v196 = vpack.c.bf16 %v192, %v192
  %v197 = vpack.c.bf16 %v193, %v193
  %v198 = vpack.c.bf16 %v194, %v194
  %v199 = vld [vmem:[%s3] sm:$0xf]
  %v200 = vld [vmem:[%s3 + $0x4] sm:$0xf]
  %v201 = vld [vmem:[%s3 + $0x8] sm:$0xf]
  %v202 = vld [vmem:[%s3 + $0xc] sm:$0xf]
  %v203 = vld [vmem:[%s3 + $0x10] sm:$0xf]
  %v204 = vld [vmem:[%s3 + $0x14] sm:$0xf]
  %v205 = vld [vmem:[%s3 + $0x18] sm:$0xf]
  %v206 = vld [vmem:[%s3 + $0x1c] sm:$0xf]
  %v207 = vld [vmem:[%s3 + $0x20] sm:$0xf]
  %v208 = vld [vmem:[%s3 + $0x24] sm:$0xf]
  %v209 = vld [vmem:[%s3 + $0x28] sm:$0xf]
  %v210 = vld [vmem:[%s3 + $0x2c] sm:$0xf]
  %v211 = vld [vmem:[%s3 + $0x30] sm:$0xf]
  %v212 = vld [vmem:[%s3 + $0x34] sm:$0xf]
  %v213 = vld [vmem:[%s3 + $0x38] sm:$0xf]
  %v214 = vld [vmem:[%s3 + $0x3c] sm:$0xf]
  %v215 = vld [vmem:[%s3 + $0x40] sm:$0xf]
  %v216 = vld [vmem:[%s3 + $0x44] sm:$0xf]
  %v217 = vld [vmem:[%s3 + $0x48] sm:$0xf]
  %v218 = vld [vmem:[%s3 + $0x4c] sm:$0xf]
  %v219 = vld [vmem:[%s3 + $0x50] sm:$0xf]
  %v220 = vld [vmem:[%s3 + $0x54] sm:$0xf]
  %v221 = vld [vmem:[%s3 + $0x58] sm:$0xf]
  %v222 = vld [vmem:[%s3 + $0x5c] sm:$0xf]
  %v223 = vld [vmem:[%s3 + $0x60] sm:$0xf]
  %v224 = vld [vmem:[%s3 + $0x64] sm:$0xf]
  %v225 = vld [vmem:[%s3 + $0x68] sm:$0xf]
  %v226 = vld [vmem:[%s3 + $0x6c] sm:$0xf]
  %v227 = vld [vmem:[%s3 + $0x70] sm:$0xf]
  %v228 = vld [vmem:[%s3 + $0x74] sm:$0xf]
  %v229 = vld [vmem:[%s3 + $0x78] sm:$0xf]
  %v230 = vld [vmem:[%s3 + $0x7c] sm:$0xf]
  %v231 = vld [vmem:[%s3 + $0x80] sm:$0xf]
  %v232 = vld [vmem:[%s3 + $0x84] sm:$0xf]
  %v233 = vld [vmem:[%s3 + $0x88] sm:$0xf]
  %v234 = vld [vmem:[%s3 + $0x8c] sm:$0xf]
  %v235 = vld [vmem:[%s3 + $0x90] sm:$0xf]
  %v236 = vld [vmem:[%s3 + $0x94] sm:$0xf]
  %v237 = vld [vmem:[%s3 + $0x98] sm:$0xf]
  %v238 = vld [vmem:[%s3 + $0x9c] sm:$0xf]
  %v239 = vld [vmem:[%s3 + $0xa0] sm:$0xf]
  %v240 = vld [vmem:[%s3 + $0xa4] sm:$0xf]
  %v241 = vld [vmem:[%s3 + $0xa8] sm:$0xf]
  %v242 = vld [vmem:[%s3 + $0xac] sm:$0xf]
  %v243 = vld [vmem:[%s3 + $0xb0] sm:$0xf]
  %v244 = vld [vmem:[%s3 + $0xb4] sm:$0xf]
  %v245 = vld [vmem:[%s3 + $0xb8] sm:$0xf]
  %v246 = vld [vmem:[%s3 + $0xbc] sm:$0xf]
  %v247 = vld [vmem:[%s3 + $0xc0] sm:$0xf]
  %v248 = vld [vmem:[%s3 + $0xc4] sm:$0xf]
  %v249 = vld [vmem:[%s3 + $0xc8] sm:$0xf]
  %v250 = vld [vmem:[%s3 + $0xcc] sm:$0xf]
  %v251 = vld [vmem:[%s3 + $0xd0] sm:$0xf]
  %v252 = vld [vmem:[%s3 + $0xd4] sm:$0xf]
  %v253 = vld [vmem:[%s3 + $0xd8] sm:$0xf]
  %v254 = vld [vmem:[%s3 + $0xdc] sm:$0xf]
  %v255 = vld [vmem:[%s3 + $0xe0] sm:$0xf]
  %v256 = vld [vmem:[%s3 + $0xe4] sm:$0xf]
  %v257 = vld [vmem:[%s3 + $0xe8] sm:$0xf]
  %v258 = vld [vmem:[%s3 + $0xec] sm:$0xf]
  %v259 = vld [vmem:[%s3 + $0xf0] sm:$0xf]
  %v260 = vld [vmem:[%s3 + $0xf4] sm:$0xf]
  %v261 = vld [vmem:[%s3 + $0xf8] sm:$0xf]
  %v262 = vld [vmem:[%s3 + $0xfc] sm:$0xf]
  %v263 = vld [vmem:[%s4] sm:$0x1]
  %v265 = vlaneseq
  %v266 = vshrl.u32 %v265, 7
  %v267 = vsub.s32 0, %v266
  %v268 = vrot.slane %v263, %v267
  %v334 = vunpack.c.l.b16 %v199
  %v335 = vunpack.c.l.b16 %v200
  %v336 = vunpack.c.l.b16 %v201
  %v337 = vunpack.c.l.b16 %v202
  %v338 = vunpack.c.l.b16 %v203
  %v339 = vunpack.c.l.b16 %v204
  %v340 = vunpack.c.l.b16 %v205
  %v341 = vunpack.c.l.b16 %v206
  %v342 = vunpack.c.l.b16 %v207
  %v343 = vunpack.c.l.b16 %v208
  %v344 = vunpack.c.l.b16 %v209
  %v345 = vunpack.c.l.b16 %v210
  %v346 = vunpack.c.l.b16 %v211
  %v347 = vunpack.c.l.b16 %v212
  %v348 = vunpack.c.l.b16 %v213
  %v349 = vunpack.c.l.b16 %v214
  %v350 = vunpack.c.l.b16 %v215
  %v351 = vunpack.c.l.b16 %v216
  %v352 = vunpack.c.l.b16 %v217
  %v353 = vunpack.c.l.b16 %v218
  %v354 = vunpack.c.l.b16 %v219
  %v355 = vunpack.c.l.b16 %v220
  %v356 = vunpack.c.l.b16 %v221
  %v357 = vunpack.c.l.b16 %v222
  %v358 = vunpack.c.l.b16 %v223
  %v359 = vunpack.c.l.b16 %v224
  %v360 = vunpack.c.l.b16 %v225
  %v361 = vunpack.c.l.b16 %v226
  %v362 = vunpack.c.l.b16 %v227
  %v363 = vunpack.c.l.b16 %v228
  %v364 = vunpack.c.l.b16 %v229
  %v365 = vunpack.c.l.b16 %v230
  %v366 = vunpack.c.l.b16 %v231
  %v367 = vunpack.c.l.b16 %v232
  %v368 = vunpack.c.l.b16 %v233
  %v369 = vunpack.c.l.b16 %v234
  %v370 = vunpack.c.l.b16 %v235
  %v371 = vunpack.c.l.b16 %v236
  %v372 = vunpack.c.l.b16 %v237
  %v373 = vunpack.c.l.b16 %v238
  %v374 = vunpack.c.l.b16 %v239
  %v375 = vunpack.c.l.b16 %v240
  %v376 = vunpack.c.l.b16 %v241
  %v377 = vunpack.c.l.b16 %v242
  %v378 = vunpack.c.l.b16 %v243
  %v379 = vunpack.c.l.b16 %v244
  %v380 = vunpack.c.l.b16 %v245
  %v381 = vunpack.c.l.b16 %v246
  %v382 = vunpack.c.l.b16 %v247
  %v383 = vunpack.c.l.b16 %v248
  %v384 = vunpack.c.l.b16 %v249
  %v385 = vunpack.c.l.b16 %v250
  %v386 = vunpack.c.l.b16 %v251
  %v387 = vunpack.c.l.b16 %v252
  %v388 = vunpack.c.l.b16 %v253
  %v389 = vunpack.c.l.b16 %v254
  %v390 = vunpack.c.l.b16 %v255
  %v391 = vunpack.c.l.b16 %v256
  %v392 = vunpack.c.l.b16 %v257
  %v393 = vunpack.c.l.b16 %v258
  %v394 = vunpack.c.l.b16 %v259
  %v395 = vunpack.c.l.b16 %v260
  %v396 = vunpack.c.l.b16 %v261
  %v397 = vunpack.c.l.b16 %v262
  %v398 = vpack.c.b16 %v335, %v334
  %v399 = vpack.c.b16 %v337, %v336
  %v400 = vpack.c.b16 %v339, %v338
  %v401 = vpack.c.b16 %v341, %v340
  %v402 = vpack.c.b16 %v343, %v342
  %v403 = vpack.c.b16 %v345, %v344
  %v404 = vpack.c.b16 %v347, %v346
  %v405 = vpack.c.b16 %v349, %v348
  %v406 = vpack.c.b16 %v351, %v350
  %v407 = vpack.c.b16 %v353, %v352
  %v408 = vpack.c.b16 %v355, %v354
  %v409 = vpack.c.b16 %v357, %v356
  %v410 = vpack.c.b16 %v359, %v358
  %v411 = vpack.c.b16 %v361, %v360
  %v412 = vpack.c.b16 %v363, %v362
  %v413 = vpack.c.b16 %v365, %v364
  %v414 = vpack.c.b16 %v367, %v366
  %v415 = vpack.c.b16 %v369, %v368
  %v416 = vpack.c.b16 %v371, %v370
  %v417 = vpack.c.b16 %v373, %v372
  %v418 = vpack.c.b16 %v375, %v374
  %v419 = vpack.c.b16 %v377, %v376
  %v420 = vpack.c.b16 %v379, %v378
  %v421 = vpack.c.b16 %v381, %v380
  %v422 = vpack.c.b16 %v383, %v382
  %v423 = vpack.c.b16 %v385, %v384
  %v424 = vpack.c.b16 %v387, %v386
  %v425 = vpack.c.b16 %v389, %v388
  %v426 = vpack.c.b16 %v391, %v390
  %v427 = vpack.c.b16 %v393, %v392
  %v428 = vpack.c.b16 %v395, %v394
  %v429 = vpack.c.b16 %v397, %v396
  %462 = vmatprep.subr.bf16.mxu0 0
  %463 = vmatpush1.bf16.msra.mxu0 %v398
  %464 = vmatprep.subr.bf16.mxu0 0
  %465 = vmatpush1.bf16.msra.mxu0 %v399
  %466 = vmatprep.subr.bf16.mxu0 0
  %467 = vmatpush1.bf16.msra.mxu0 %v400
  %468 = vmatprep.subr.bf16.mxu0 0
  %469 = vmatpush1.bf16.msra.mxu0 %v401
  %470 = vmatprep.subr.bf16.mxu0 0
  %471 = vmatpush1.bf16.msra.mxu0 %v402
  %472 = vmatprep.subr.bf16.mxu0 0
  %473 = vmatpush1.bf16.msra.mxu0 %v403
  %474 = vmatprep.subr.bf16.mxu0 0
  %475 = vmatpush1.bf16.msra.mxu0 %v404
  %476 = vmatprep.subr.bf16.mxu0 0
  %477 = vmatpush1.bf16.msra.mxu0 %v405
  %478 = vmatprep.subr.bf16.mxu0 0
  %479 = vmatpush1.bf16.msra.mxu0 %v406
  %480 = vmatprep.subr.bf16.mxu0 0
  %481 = vmatpush1.bf16.msra.mxu0 %v407
  %482 = vmatprep.subr.bf16.mxu0 0
  %483 = vmatpush1.bf16.msra.mxu0 %v408
  %484 = vmatprep.subr.bf16.mxu0 0
  %485 = vmatpush1.bf16.msra.mxu0 %v409
  %486 = vmatprep.subr.bf16.mxu0 0
  %487 = vmatpush1.bf16.msra.mxu0 %v410
  %488 = vmatprep.subr.bf16.mxu0 0
  %489 = vmatpush1.bf16.msra.mxu0 %v411
  %490 = vmatprep.subr.bf16.mxu0 0
  %491 = vmatpush1.bf16.msra.mxu0 %v412
  %492 = vmatprep.subr.bf16.mxu0 0
  %493 = vmatpush1.bf16.msra.mxu0 %v413
  %494 = vmatprep.mubr.bf16.mxu0 %v196
  %495 = vmatmul.mubr.bf16.gmra.mrb[0].mxu0 %v195
  %v496 = vpop.f32.mrb[0].mxu0
  %v497 = vadd.f32 %v268, %v496
  %v498 = vpop.f32.mrb[0].mxu0
  %v499 = vpop.f32.mrb[0].mxu0
  %v500 = vpop.f32.mrb[0].mxu0
  %501 = vdwg.mxu0
  %502 = vmatprep.subr.bf16.mxu0 0
  %503 = vmatpush1.bf16.msra.mxu0 %v414
  %504 = vmatprep.subr.bf16.mxu0 0
  %505 = vmatpush1.bf16.msra.mxu0 %v415
  %506 = vmatprep.subr.bf16.mxu0 0
  %507 = vmatpush1.bf16.msra.mxu0 %v416
  %508 = vmatprep.subr.bf16.mxu0 0
  %509 = vmatpush1.bf16.msra.mxu0 %v417
  %510 = vmatprep.subr.bf16.mxu0 0
  %511 = vmatpush1.bf16.msra.mxu0 %v418
  %512 = vmatprep.subr.bf16.mxu0 0
  %513 = vmatpush1.bf16.msra.mxu0 %v419
  %514 = vmatprep.subr.bf16.mxu0 0
  %515 = vmatpush1.bf16.msra.mxu0 %v420
  %516 = vmatprep.subr.bf16.mxu0 0
  %517 = vmatpush1.bf16.msra.mxu0 %v421
  %518 = vmatprep.subr.bf16.mxu0 0
  %519 = vmatpush1.bf16.msra.mxu0 %v422
  %520 = vmatprep.subr.bf16.mxu0 0
  %521 = vmatpush1.bf16.msra.mxu0 %v423
  %522 = vmatprep.subr.bf16.mxu0 0
  %523 = vmatpush1.bf16.msra.mxu0 %v424
  %524 = vmatprep.subr.bf16.mxu0 0
  %525 = vmatpush1.bf16.msra.mxu0 %v425
  %526 = vmatprep.subr.bf16.mxu0 0
  %527 = vmatpush1.bf16.msra.mxu0 %v426
  %528 = vmatprep.subr.bf16.mxu0 0
  %529 = vmatpush1.bf16.msra.mxu0 %v427
  %530 = vmatprep.subr.bf16.mxu0 0
  %531 = vmatpush1.bf16.msra.mxu0 %v428
  %532 = vmatprep.subr.bf16.mxu0 0
  %533 = vmatpush1.bf16.msra.mxu0 %v429
  %534 = vmatprep.mubr.bf16.mxu0 %v198
  %535 = vmatmul.mubr.bf16.gmra.mrb[0].mxu0 %v197
  %v536 = vpop.f32.mrb[0].mxu0
  %v537 = vadd.f32 %v497, %v536
  %v538 = vpop.f32.mrb[0].mxu0
  %v539 = vpop.f32.mrb[0].mxu0
  %v540 = vpop.f32.mrb[0].mxu0
  %541 = vdwg.mxu0
  %v542 = vmax.f32 %v537, 0.0
  %v543 = vpack.c.bf16 %v542, %v542
  %v544 = vld [vmem:[%s5] sm:$0xf]
  %v545 = vld [vmem:[%s5 + $0x4] sm:$0xf]
  %v546 = vld [vmem:[%s5 + $0x8] sm:$0xf]
  %v547 = vld [vmem:[%s5 + $0xc] sm:$0xf]
  %v548 = vld [vmem:[%s5 + $0x10] sm:$0xf]
  %v549 = vld [vmem:[%s5 + $0x14] sm:$0xf]
  %v550 = vld [vmem:[%s5 + $0x18] sm:$0xf]
  %v551 = vld [vmem:[%s5 + $0x1c] sm:$0xf]
  %v552 = vld [vmem:[%s5 + $0x20] sm:$0xf]
  %v553 = vld [vmem:[%s5 + $0x24] sm:$0xf]
  %v554 = vld [vmem:[%s5 + $0x28] sm:$0xf]
  %v555 = vld [vmem:[%s5 + $0x2c] sm:$0xf]
  %v556 = vld [vmem:[%s5 + $0x30] sm:$0x3]
  %v557 = vld [vmem:[%s6] sm:$0x1]
  %v559 = vlaneseq
  %v560 = vshrl.u32 %v559, 7
  %v561 = vsub.s32 0, %v560
  %v562 = vrot.slane %v557, %v561
  %v577 = vunpack.c.l.b16 %v544
  %v578 = vunpack.c.l.b16 %v545
  %v579 = vunpack.c.l.b16 %v546
  %v580 = vunpack.c.l.b16 %v547
  %v581 = vunpack.c.l.b16 %v548
  %v582 = vunpack.c.l.b16 %v549
  %v583 = vunpack.c.l.b16 %v550
  %v584 = vunpack.c.l.b16 %v551
  %v585 = vunpack.c.l.b16 %v552
  %v586 = vunpack.c.l.b16 %v553
  %v587 = vunpack.c.l.b16 %v554
  %v588 = vunpack.c.l.b16 %v555
  %v589 = vunpack.c.l.b16 %v556
  %v590 = vpack.c.b16 %v578, %v577
  %v591 = vpack.c.b16 %v580, %v579
  %v592 = vpack.c.b16 %v582, %v581
  %v593 = vpack.c.b16 %v584, %v583
  %v594 = vpack.c.b16 %v586, %v585
  %v595 = vpack.c.b16 %v588, %v587
  %v596 = vpack.c.b16 %v589, %v589
  %vm603 = vcmask 818176
  %v605 = vsel %vm603, %v543, 0
  %vm607 = vcmask 1041408
  %v609 = vsel %vm607, %v596, 0
  %611 = vmatprep.subr.bf16.mxu0 0
  %612 = vmatpush1.bf16.msra.mxu0 %v590
  %613 = vmatprep.subr.bf16.mxu0 0
  %614 = vmatpush1.bf16.msra.mxu0 %v591
  %615 = vmatprep.subr.bf16.mxu0 0
  %616 = vmatpush1.bf16.msra.mxu0 %v592
  %617 = vmatprep.subr.bf16.mxu0 0
  %618 = vmatpush1.bf16.msra.mxu0 %v593
  %619 = vmatprep.subr.bf16.mxu0 0
  %620 = vmatpush1.bf16.msra.mxu0 %v594
  %621 = vmatprep.subr.bf16.mxu0 0
  %622 = vmatpush1.bf16.msra.mxu0 %v595
  %623 = vmatprep.subr.bf16.mxu0 0
  %624 = vmatpush1.bf16.msra.mxu0 %v609
  %625 = vmatprep.subr.bf16.mxu0 0
  %626 = vmatpush1.bf16.msra.mxu0 0
  %627 = vmatprep.subr.bf16.mxu0 0
  %628 = vmatpush1.bf16.msra.mxu0 0
  %629 = vmatprep.subr.bf16.mxu0 0
  %630 = vmatpush1.bf16.msra.mxu0 0
  %631 = vmatprep.subr.bf16.mxu0 0
  %632 = vmatpush1.bf16.msra.mxu0 0
  %633 = vmatprep.subr.bf16.mxu0 0
  %634 = vmatpush1.bf16.msra.mxu0 0
  %635 = vmatprep.subr.bf16.mxu0 0
  %636 = vmatpush1.bf16.msra.mxu0 0
  %637 = vmatprep.subr.bf16.mxu0 0
  %638 = vmatpush1.bf16.msra.mxu0 0
  %639 = vmatprep.subr.bf16.mxu0 0
  %640 = vmatpush1.bf16.msra.mxu0 0
  %641 = vmatprep.subr.bf16.mxu0 0
  %642 = vmatpush1.bf16.msra.mxu0 0
  %643 = vmatprep.mubr.bf16.mxu0 0
  %644 = vmatmul.mubr.bf16.gmra.mrb[0].mxu0 %v605
  %v645 = vpop.f32.mrb[0].mxu0
  %v646 = vadd.f32 %v562, %v645
  %v647 = vpop.f32.mrb[0].mxu0
  %v648 = vpop.f32.mrb[0].mxu0
  %v649 = vpop.f32.mrb[0].mxu0
  %650 = vdwg.mxu0
  %v651 = vmax.f32 %v646, 0.0
  %v652 = vpack.c.bf16 %v651, %v651
  %v653 = vld [vmem:[%s7] sm:$0xf]
  %v654 = vld [vmem:[%s7 + $0x4] sm:$0xf]
  %v655 = vld [vmem:[%s7 + $0x8] sm:$0x3]
  %v656 = vld [vmem:[%s8] sm:$0x1]
  %v658 = vlaneseq
  %v659 = vshrl.u32 %v658, 7
  %v660 = vsub.s32 0, %v659
  %v661 = vrot.slane %v656, %v660
  %v666 = vunpack.c.l.b16 %v653
  %v667 = vunpack.c.l.b16 %v654
  %v668 = vunpack.c.l.b16 %v655
  %v669 = vpack.c.b16 %v667, %v666
  %v670 = vpack.c.b16 %v668, %v668
  %vm672 = vcmask 162816
  %v674 = vsel %vm672, %v652, 0
  %v677 = vsel %vm607, %v670, 0
  %679 = vmatprep.subr.bf16.mxu0 0
  %680 = vmatpush1.bf16.msra.mxu0 %v669
  %681 = vmatprep.subr.bf16.mxu0 0
  %682 = vmatpush1.bf16.msra.mxu0 %v677
  %683 = vmatprep.subr.bf16.mxu0 0
  %684 = vmatpush1.bf16.msra.mxu0 0
  %685 = vmatprep.subr.bf16.mxu0 0
  %686 = vmatpush1.bf16.msra.mxu0 0
  %687 = vmatprep.subr.bf16.mxu0 0
  %688 = vmatpush1.bf16.msra.mxu0 0
  %689 = vmatprep.subr.bf16.mxu0 0
  %690 = vmatpush1.bf16.msra.mxu0 0
  %691 = vmatprep.subr.bf16.mxu0 0
  %692 = vmatpush1.bf16.msra.mxu0 0
  %693 = vmatprep.subr.bf16.mxu0 0
  %694 = vmatpush1.bf16.msra.mxu0 0
  %695 = vmatprep.subr.bf16.mxu0 0
  %696 = vmatpush1.bf16.msra.mxu0 0
  %697 = vmatprep.subr.bf16.mxu0 0
  %698 = vmatpush1.bf16.msra.mxu0 0
  %699 = vmatprep.subr.bf16.mxu0 0
  %700 = vmatpush1.bf16.msra.mxu0 0
  %701 = vmatprep.subr.bf16.mxu0 0
  %702 = vmatpush1.bf16.msra.mxu0 0
  %703 = vmatprep.subr.bf16.mxu0 0
  %704 = vmatpush1.bf16.msra.mxu0 0
  %705 = vmatprep.subr.bf16.mxu0 0
  %706 = vmatpush1.bf16.msra.mxu0 0
  %707 = vmatprep.subr.bf16.mxu0 0
  %708 = vmatpush1.bf16.msra.mxu0 0
  %709 = vmatprep.subr.bf16.mxu0 0
  %710 = vmatpush1.bf16.msra.mxu0 0
  %711 = vmatprep.mubr.bf16.mxu0 0
  %712 = vmatmul.mubr.bf16.gmra.mrb[0].mxu0 %v674
  %v713 = vpop.f32.mrb[0].mxu0
  %v714 = vadd.f32 %v661, %v713
  %v715 = vpop.f32.mrb[0].mxu0
  %v716 = vpop.f32.mrb[0].mxu0
  %v717 = vpop.f32.mrb[0].mxu0
  %718 = vdwg.mxu0
  %vm719 = vcmask 15360
  %720 = vst.msk [vmem:[%s9] sm:$0xff] %vm719, %v714
  // Predicated region
  $region38: #{mlp_forward.1} parent=0 // pred_check
    _
  $region39: #{mlp_forward.1} parent=0 // pred_check_branch
    %722 = sbr.rel (0) target = $region41
  $region40: #{mlp_forward.1} parent=0 // pred_region
    _
  $region41: #{mlp_forward.1} parent=0 // pred_fallthru
    _
  // Predicated region
  $region42: #{mlp_forward.1} parent=0 // pred_check
    _
  $region43: #{mlp_forward.1} parent=0 // pred_check_branch
    %724 = sbr.rel (0) target = $region45
  $region44: #{mlp_forward.1} parent=0 // pred_region
    _
  $region45: #{mlp_forward.1} parent=0 // pred_fallthru
    _

</llo_original>
